<compile_context>
chip_gen: v7x
topology: tpu7x:2x2x1
jax: 0.10.0
libtpu: 0.0.40
codegen_flags: <defaults>
</compile_context>

<pallas_src>
import functools
import re
from collections import Counter

import jax
import jax.numpy as jnp
from jax import lax
from jax.experimental import pallas as pl
from jax.experimental.pallas import tpu as pltpu

embedding_dim = 10

text = (' Word2Vec is a technique used in natural language processing\n'
        'to represent words as vectors. It captures semantic relationships between words.')


def preprocess(t):
    t = t.lower()
    t = re.sub('[^a-z\\s]', '', t)
    return t.split()


words = preprocess(text)
word_counts = Counter(words)
vocab = list(word_counts.keys())
vocab_size = len(vocab)


def _round_up(x, m):
    return (x + m - 1) // m * m


# ---------------------------------------------------------------------------
# Kernel helpers
# ---------------------------------------------------------------------------

def _mm_store(gather_ref, wt_ref, b_ref, out_ref, bi):
    """out[bi-tile, j-tile] = gathered_rows(bi) @ W[:, j-tile] + b[j-tile]."""
    tb = out_ref.shape[0]
    start = pl.multiple_of(bi * tb, 8)
    rows = gather_ref[pl.ds(start, tb), :]                       # (TB, Dp)
    out_ref[...] = jnp.dot(rows, wt_ref[...],
                           preferred_element_type=jnp.float32) + b_ref[...]


def _gather_tile_from_vmem(idx_ref, emb_ref, gather_ref, bi, tb):
    """Copy TB embedding rows for batch tile `bi` from the VMEM-resident table."""
    base = bi * tb

    def body(r, carry):
        row = idx_ref[base + r]                                  # scalar read from SMEM
        gather_ref[pl.ds(base + r, 1), :] = emb_ref[pl.ds(row, 1), :]
        return carry

    lax.fori_loop(0, tb, body, 0)


def _gather_tile_from_hbm(idx_ref, emb_hbm, gather_ref, sems, bi, tb):
    """DMA TB embedding rows for batch tile `bi` from the HBM table."""
    base = bi * tb
    copies = []
    for r in range(tb):                                          # static trip count
        row = idx_ref[base + r]
        cp = pltpu.make_async_copy(
            emb_hbm.at[pl.ds(row, 1), :],                        # (1, Dp) row in HBM
            gather_ref.at[pl.ds(base + r, 1), :],                # (1, Dp) row in VMEM
            sems.at[r],
        )
        cp.start()
        copies.append(cp)
    for cp in copies:
        cp.wait()


# ---------------------------------------------------------------------------
# Kernels
# ---------------------------------------------------------------------------

def word2vec_kernel_vmem(idx_ref, emb_ref, wt_ref, b_ref, out_ref, gather_ref,
                         *, gather_every_step):
    """Fast path: full padded embedding table resident in VMEM.

    idx_ref    : (Bp,)    int32  SMEM (scalar prefetch), clamped word indices
    emb_ref    : (Vp, Dp)        VMEM, whole table (constant index_map -> DMA'd once)
    wt_ref     : (Dp, TN)        VMEM, pre-transposed weight tile (changes only with j)
    b_ref      : (1, TN)  f32    VMEM bias tile
    out_ref    : (TB, TN) f32    VMEM logits tile (lane-dense)
    gather_ref : (Bp, Dp)        VMEM scratch, gathered embedding rows
    """
    j = pl.program_id(0)
    bi = pl.program_id(1)
    tb = out_ref.shape[0]

    if gather_every_step:
        # Single batch tile: re-gathering each step is cheap and lets BOTH grid axes be
        # "parallel" (v7x megacore) because nothing persists across grid steps.
        _gather_tile_from_vmem(idx_ref, emb_ref, gather_ref, bi, tb)
    else:
        @pl.when(j == 0)
        def _():
            _gather_tile_from_vmem(idx_ref, emb_ref, gather_ref, bi, tb)

    _mm_store(gather_ref, wt_ref, b_ref, out_ref, bi)


def word2vec_kernel_hbm(idx_ref, emb_hbm, wt_ref, b_ref, out_ref, gather_ref, sems):
    """Fallback for large vocab: table stays in HBM, rows gathered by manual DMA."""
    j = pl.program_id(0)
    bi = pl.program_id(1)
    tb = out_ref.shape[0]

    @pl.when(j == 0)                 # gather each batch tile exactly once (j is outer)
    def _():
        _gather_tile_from_hbm(idx_ref, emb_hbm, gather_ref, sems, bi, tb)

    _mm_store(gather_ref, wt_ref, b_ref, out_ref, bi)


# ---------------------------------------------------------------------------
# Parameter packing + forward wrapper
# ---------------------------------------------------------------------------

def prepare_params(emb_table, lin_weight, lin_bias, *, param_dtype=jnp.bfloat16):
    """One-time packing: pad to TPU-friendly shapes, pre-transpose the linear weight to
    (Dp, Vp).  bf16 by default on ALL generations (v5e's MXU is native bf16 and it has
    the least HBM bandwidth); accumulation stays f32 and the bias stays f32."""
    V, D = emb_table.shape
    Dp = _round_up(D, 128)   # contraction dim (full lane-rows for gathered embeddings)
    Vp = _round_up(V, 128)   # lane-dense vocab dim -> unmasked output stores

    emb_p = jnp.zeros((Vp, Dp), param_dtype).at[:V, :D].set(emb_table.astype(param_dtype))
    wt_p = jnp.zeros((Dp, Vp), param_dtype).at[:D, :V].set(lin_weight.T.astype(param_dtype))
    b_p = jnp.zeros((1, Vp), jnp.float32).at[0, :V].set(lin_bias.astype(jnp.float32))
    return dict(emb=emb_p, wt=wt_p, bias=b_p, vocab_size=V)


def word2vec_forward(input_word, params, *, tn_max=2048, tb_max=256,
                     vmem_table_bytes_max=8 * 1024 * 1024):
    """Forward pass: (B,) int indices -> (B, V) f32 logits."""
    emb_p, wt_p, b_p, V = params["emb"], params["wt"], params["bias"], params["vocab_size"]
    Vp, Dp = emb_p.shape
    B = int(input_word.shape[0])

    # PyTorch nn.Embedding raises on out-of-range indices; clamp so the row gather can
    # never read out of bounds (OOB reads are unchecked on TPU).
    idx = jnp.clip(input_word.astype(jnp.int32), 0, V - 1)

    # Batch padding: only round to 8 sublanes; TB is then chosen as a divisor of Bp
    # (multiple of 8, <= tb_max) so no additional padded rows are gathered/multiplied.
    Bp = _round_up(B, 8)
    idx = jnp.pad(idx, (0, Bp - B))          # padded rows reuse index 0 (valid), sliced off below
    TB = min(_round_up(tb_max, 8), Bp)
    while Bp % TB:
        TB -= 8

    # Vocab tile: largest multiple of 128 that divides Vp and is <= tn_max.
    tn_cap = min(tn_max, Vp)
    TN = 128
    for cand in range(128, tn_cap + 1, 128):
        if Vp % cand == 0:
            TN = cand

    n_vt, n_bt = Vp // TN, Bp // TB
    grid = (n_vt, n_bt)                      # j outer, bi inner: weight DMA'd once per j

    table_bytes = Vp * Dp * emb_p.dtype.itemsize
    table_in_vmem = table_bytes <= vmem_table_bytes_max
    gather_every_step = table_in_vmem and n_bt == 1

    # VMEM budget derived from actual buffer sizes (double-buffered inputs/outputs).
    wsz = wt_p.dtype.itemsize
    needed = (2 * Dp * TN * wsz              # weight tiles (double-buffered)
              + 2 * TB * TN * 4              # f32 output tiles
              + 2 * TN * 4                   # bias tiles
              + Bp * Dp * emb_p.dtype.itemsize  # gather scratch
              + (table_bytes if table_in_vmem else 0))
    vmem_limit = int(min(max(needed + (4 << 20), 16 << 20), 64 << 20))

    wt_spec = pl.BlockSpec((Dp, TN), lambda j, bi, idx: (0, j))   # depends only on j
    b_spec = pl.BlockSpec((1, TN), lambda j, bi, idx: (0, j))
    out_spec = pl.BlockSpec((TB, TN), lambda j, bi, idx: (bi, j))

    if table_in_vmem:
        kernel = functools.partial(word2vec_kernel_vmem,
                                   gather_every_step=gather_every_step)
        emb_spec = pl.BlockSpec((Vp, Dp), lambda j, bi, idx: (0, 0))  # whole table, one DMA
        scratch = [pltpu.VMEM((Bp, Dp), emb_p.dtype)]
        dims = ("parallel", "parallel") if gather_every_step else ("arbitrary", "parallel")
    else:
        kernel = word2vec_kernel_hbm
        emb_spec = pl.BlockSpec(memory_space=pl.ANY)                  # table stays in HBM
        scratch = [pltpu.VMEM((Bp, Dp), emb_p.dtype),
                   pltpu.SemaphoreType.DMA((TB,))]
        dims = ("arbitrary", "parallel")

    out = pl.pallas_call(
        kernel,
        out_shape=jax.ShapeDtypeStruct((Bp, Vp), jnp.float32),
        grid_spec=pltpu.PrefetchScalarGridSpec(
            num_scalar_prefetch=1,           # idx -> SMEM, fed to every index_map
            grid=grid,
            in_specs=[emb_spec, wt_spec, b_spec],
            out_specs=out_spec,
            scratch_shapes=scratch,
        ),
        compiler_params=pltpu.CompilerParams(
            dimension_semantics=dims,
            vmem_limit_bytes=vmem_limit,
        ),
    )(idx, emb_p, wt_p, b_p)

    return out[:B, :V]


# ---------------------------------------------------------------------------
# Demo / correctness check
# ---------------------------------------------------------------------------

if __name__ == "__main__":
    key = jax.random.PRNGKey(0)
    k_emb, k_w, k_b, k_idx = jax.random.split(key, 4)

    V, D = vocab_size, embedding_dim
    B = 8  # small batch of input words (multiple of 8 sublanes)

    # Deterministic synthetic parameters (shapes match nn.Embedding / nn.Linear).
    emb_table = jax.random.normal(k_emb, (V, D), dtype=jnp.float32)           # Embedding.weight (V, D)
    bound = 1.0 / (D ** 0.5)
    lin_weight = jax.random.uniform(k_w, (V, D), jnp.float32, -bound, bound)  # Linear.weight (V, D)
    lin_bias = jax.random.uniform(k_b, (V,), jnp.float32, -bound, bound)      # Linear.bias   (V,)

    input_word = jax.random.randint(k_idx, (B,), 0, V, dtype=jnp.int32)

    # Reference in plain JAX (embedding gather + linear).
    ref = emb_table[input_word] @ lin_weight.T + lin_bias

    # 1) f32 params, VMEM fast path -> exact check.
    params_f32 = prepare_params(emb_table, lin_weight, lin_bias, param_dtype=jnp.float32)
    out = jax.block_until_ready(word2vec_forward(input_word, params_f32))
    assert out.shape == (B, V)
    assert jnp.allclose(out, ref, atol=1e-5, rtol=1e-5)

    # 2) bf16 params (the recommended production setting) -> loose tolerance.
    params_bf16 = prepare_params(emb_table, lin_weight, lin_bias)             # default bf16
    out_bf16 = jax.block_until_ready(word2vec_forward(input_word, params_bf16))
    assert jnp.allclose(out_bf16, ref, atol=3e-2, rtol=3e-2)

    # 3) Force the large-vocab fallback path (table in HBM, manual row DMAs).
    out_hbm = jax.block_until_ready(
        word2vec_forward(input_word, params_f32, vmem_table_bytes_max=0))
    assert jnp.allclose(out_hbm, ref, atol=1e-5, rtol=1e-5)

    print("KERNEL_OK")
</pallas_src>

<mosaic_0001>
module attributes {stable_mosaic.version = 11 : i64} {
  func.func @word2vec_kernel_vmem(%arg0: i32, %arg1: i32, %arg2: memref<8xi32, #tpu.memory_space<smem>>, %arg3: memref<128x128xf32, #tpu.memory_space<vmem>>, %arg4: memref<128x128xf32, #tpu.memory_space<vmem>>, %arg5: memref<1x128xf32, #tpu.memory_space<vmem>>, %arg6: memref<8x128xf32, #tpu.memory_space<vmem>>, %arg7: memref<8x128xf32, #tpu.memory_space<vmem>>) attributes {dimension_semantics = [#tpu.dimension_semantics<parallel>, #tpu.dimension_semantics<parallel>], iteration_bounds = array<i64: 1, 1>, scalar_prefetch = 1 : i64, scratch_operands = 1 : i64, tpu.core_type = #tpu.core_type<tc>, window_params = [{pipeline_mode = #tpu.pipeline_mode<synchronous>, transform_indices = @transform_0, window_bounds = array<i64: 128, 128>}, {transform_indices = @transform_1, window_bounds = array<i64: 128, 128>}, {transform_indices = @transform_2, window_bounds = array<i64: 1, 128>}, {transform_indices = @transform_3, window_bounds = array<i64: 8, 128>}]} {
    %c8_i32 = arith.constant 8 : i32
    %0 = arith.muli %arg1, %c8_i32 : i32
    %c0_i32 = arith.constant 0 : i32
    %c8_i32_0 = arith.constant 8 : i32
    %1 = arith.addi %c0_i32, %c8_i32_0 : i32
    %c1_i32 = arith.constant 1 : i32
    scf.for %arg8 = %c0_i32 to %1 step %c1_i32  : i32 {
      %12 = arith.addi %0, %arg8 : i32
      %13 = arith.index_cast %12 : i32 to index
      %14 = memref.load %arg2[%13] : memref<8xi32, #tpu.memory_space<smem>>
      %15 = arith.index_cast %14 : i32 to index
      %c0_9 = arith.constant 0 : index
      %16 = vector.load %arg3[%15, %c0_9] : memref<128x128xf32, #tpu.memory_space<vmem>>, vector<1x128xf32>
      %17 = arith.addi %0, %arg8 : i32
      %18 = arith.index_cast %17 : i32 to index
      %c0_10 = arith.constant 0 : index
      %19 = vector.load %arg7[%18, %c0_10] : memref<8x128xf32, #tpu.memory_space<vmem>>, vector<1x128xf32>
      tpu.vector_store %arg7[%18, %c0_10], %16 {strides = array<i32>} : memref<8x128xf32, #tpu.memory_space<vmem>>, vector<1x128xf32>,
    }
    %c8_i32_1 = arith.constant 8 : i32
    %c8_i32_2 = arith.constant 8 : i32
    %2 = arith.muli %arg1, %c8_i32_2 : i32
    %3 = tpu.assume_multiple %2, 8 : i32
    %4 = arith.index_cast %3 : i32 to index
    %c0 = arith.constant 0 : index
    %5 = vector.load %arg7[%4, %c0] : memref<8x128xf32, #tpu.memory_space<vmem>>, vector<8x128xf32>
    %c0_3 = arith.constant 0 : index
    %c0_4 = arith.constant 0 : index
    %6 = vector.load %arg4[%c0_3, %c0_4] : memref<128x128xf32, #tpu.memory_space<vmem>>, vector<128x128xf32>
    %cst = arith.constant dense<0.000000e+00> : vector<8x128xf32>
    %7 = tpu.matmul %5, %6, %cst {dimension_numbers = #tpu.dot_dimension_numbers<[1], [0], [0], [1], [0, 0, 1, 1], [], []>} : vector<8x128xf32>, vector<128x128xf32>, vector<8x128xf32> -> vector<8x128xf32>
    %c0_5 = arith.constant 0 : index
    %c0_6 = arith.constant 0 : index
    %8 = vector.load %arg5[%c0_5, %c0_6] : memref<1x128xf32, #tpu.memory_space<vmem>>, vector<1x128xf32>
    %9 = vector.broadcast %8 : vector<1x128xf32> to vector<8x128xf32>
    %10 = arith.addf %7, %9 : vector<8x128xf32>
    %c0_7 = arith.constant 0 : index
    %c0_8 = arith.constant 0 : index
    %11 = vector.load %arg6[%c0_7, %c0_8] : memref<8x128xf32, #tpu.memory_space<vmem>>, vector<8x128xf32>
    tpu.vector_store %arg6[%c0_7, %c0_8], %10 {strides = array<i32>} : memref<8x128xf32, #tpu.memory_space<vmem>>, vector<8x128xf32>,
    return
  }
  func.func @transform_0(%arg0: i32, %arg1: i32, %arg2: memref<8xi32, #tpu.memory_space<smem>>) -> (i32, i32) {
    %c0_i32 = arith.constant 0 : i32
    %c0_i32_0 = arith.constant 0 : i32
    %c0_i32_1 = arith.constant 0 : i32
    return %c0_i32, %c0_i32_0 : i32, i32
  }
  func.func @transform_1(%arg0: i32, %arg1: i32, %arg2: memref<8xi32, #tpu.memory_space<smem>>) -> (i32, i32) {
    %c0_i32 = arith.constant 0 : i32
    %c0_i32_0 = arith.constant 0 : i32
    return %c0_i32, %arg0 : i32, i32
  }
  func.func @transform_2(%arg0: i32, %arg1: i32, %arg2: memref<8xi32, #tpu.memory_space<smem>>) -> (i32, i32) {
    %c0_i32 = arith.constant 0 : i32
    %c0_i32_0 = arith.constant 0 : i32
    return %c0_i32, %arg0 : i32, i32
  }
  func.func @transform_3(%arg0: i32, %arg1: i32, %arg2: memref<8xi32, #tpu.memory_space<smem>>) -> (i32, i32) {
    %c0_i32 = arith.constant 0 : i32
    return %arg1, %arg0 : i32, i32
  }
}

</mosaic_0001>

<llo_original>
// kernel: tpu_custom_call.1
$region0: #{tpu_custom_call.1}
  #allocation0 [shape = 'u32[]', space=smem, size = 0x4, offset = 0x4, fixed_abs, tag = 'smem constant byte address 0x4 - core index']
  #allocation1 [shape = 'u32[144,128]{1,0:T(1,128)}', space=vmem, size = 0x12000, scoped, tag = 'internal scratch']
  #allocation2 [shape = 'f32[8,128]{1,0:T(8,128)}', space=vmem, size = 0x1000, scoped, tag = 'scratch operand']
  #allocation3 [shape = 's32[1]{0}', space=sflag, size = 0x4, scoped, tag = 'scoped memory for tpu_custom_call.1']
  #allocation4 [shape = 'u8[512]{0}', space=smem, size = 0x200, scoped, tag = 'prefetched SMEM operand 0']
  %s0 = inlined_call_operand.hbm [shape: s32[8], index: 0, kind: input, shape index: {}]
  %s1 = inlined_call_operand.hbm [shape: f32[128,128], index: 1, kind: input, shape index: {}]
  %s2 = inlined_call_operand.hbm [shape: f32[128,128], index: 2, kind: input, shape index: {}]
  %s3 = inlined_call_operand.vmem [shape: f32[1,128], index: 3, kind: input, shape index: {}]
  %s4 = inlined_call_operand.hbm [shape: f32[8,128], index: 4, kind: output, shape index: {}]
  %s5 = sld [smem:[#allocation0]]
  $region37: #{tpu_custom_call.1} parent=0
    _
  %s7 = ssub.s32 1, %s5
  %s8 = scalar_select 0, %s7, %s5
  %10 = dma.hbm_to_smem %s0, 16, [#allocation4], [#allocation3]
  %11 = dma.done [#allocation3], 16
  %12 = sfence
  $region1: #{tpu_custom_call.1} parent=0
    #allocation5 [shape = 'u8[65536]{0}', space=vmem, size = 0x10000, scoped, tag = 'input window, operand 1, single buffered']
    #allocation6 [shape = 's32[1]{0}', space=sflag, size = 0x4, scoped, tag = 'scoped memory for tpu_custom_call.1']
    #allocation7 [shape = 's32[1]{0}', space=sflag, size = 0x4, scoped, tag = 'scoped memory for tpu_custom_call.1']
    #allocation8 [shape = 'u8[65536]{0}', space=vmem, size = 0x10000, scoped, tag = 'input window, operand 2, single buffered']
    #allocation9 [shape = 's32[1]{0}', space=sflag, size = 0x4, scoped, tag = 'scoped memory for tpu_custom_call.1']
    #allocation10 [shape = 'u8[4096]{0}', space=vmem, size = 0x1000, scoped, tag = 'output window, operand 0, single buffered']
    %13 = vsyncpa [#allocation6], 0
    %14 = vsyncpa [#allocation9], 0
    %15 = vsyncpa [#allocation7], 0
    // Predicated region
    $region2: #{tpu_custom_call.1} parent=1 // pred_check
      _
    $region3: #{tpu_custom_call.1} parent=1 // pred_check_branch
      %17 = sbr.rel (0) target = $region5
    $region4: #{tpu_custom_call.1} parent=1 // pred_region
      %s19 = ssub.s32 2048, 2048
      %20 = vsyncadd [#allocation6], %s19
      %s21 = sshll.u32 [#allocation5], 4
      %s22 = int_to_ptr.vmem [resolvable:$true] %s21
      %27 = dma.hbm_to_vmem [thread:$0]  %s1, 2048, %s22, [#allocation6], 128, 128, 8
    $region5: #{tpu_custom_call.1} parent=1 // pred_fallthru
      _
    // Predicated region
    $region6: #{tpu_custom_call.1} parent=1 // pred_check
      _
    $region7: #{tpu_custom_call.1} parent=1 // pred_check_branch
      %29 = sbr.rel (0) target = $region9
    $region8: #{tpu_custom_call.1} parent=1 // pred_region
      %s31 = ssub.s32 2048, 2048
      %32 = vsyncadd [#allocation9], %s31
      %s33 = sshll.u32 [#allocation8], 4
      %s34 = int_to_ptr.vmem [resolvable:$true] %s33
      %39 = dma.hbm_to_vmem [thread:$0]  %s2, 2048, %s34, [#allocation9], 128, 128, 8
    $region9: #{tpu_custom_call.1} parent=1 // pred_fallthru
      _
    // Predicated region
    $region10: #{tpu_custom_call.1} parent=1 // pred_check
      _
    $region11: #{tpu_custom_call.1} parent=1 // pred_check_branch
      %41 = sbr.rel (0) target = $region13
    $region12: #{tpu_custom_call.1} parent=1 // pred_region
      _
    $region13: #{tpu_custom_call.1} parent=1 // pred_fallthru
      _
    // Predicated region
    $region14: #{tpu_custom_call.1} parent=1 // pred_check
      _
    $region15: #{tpu_custom_call.1} parent=1 // pred_check_branch
      %43 = sbr.rel (0) target = $region17
    $region16: #{tpu_custom_call.1} parent=1 // pred_region
      %44 = dma.done [#allocation6], 2048
    $region17: #{tpu_custom_call.1} parent=1 // pred_fallthru
      _
    // Predicated region
    $region18: #{tpu_custom_call.1} parent=1 // pred_check
      _
    $region19: #{tpu_custom_call.1} parent=1 // pred_check_branch
      %46 = sbr.rel (0) target = $region21
    $region20: #{tpu_custom_call.1} parent=1 // pred_region
      %47 = dma.done [#allocation9], 2048
    $region21: #{tpu_custom_call.1} parent=1 // pred_fallthru
      _
    %s48 = smul.u32 0, 8
    loop: start=0, step=1, limit=8
    $region22: #{tpu_custom_call.1} parent=1 // loop_pre_header
      _
    $region23: #{tpu_custom_call.1} parent=1 // loop_header
      %s50 = sphi 0, %s54
      %p51 = scmp.ge.s32.totalorder %s50, 8
    $region24: #{tpu_custom_call.1} parent=1 // loop_header_branch
      %53 = sbr.rel (%p51) target = $region28
    $region25: #{tpu_custom_call.1} parent=1 // loop_body
      %s55 = sadd.s32 %s48, %s50
      %s56 = sld [smem:[#allocation4 + %s55]]
      %s57 = scalar_lea.vmem [#allocation5], %s56
      %v58 = vld [vmem:[%s57] sm:$0x1]
      %s59 = scalar_lea.vmem [#allocation2], %s55
      %60 = vst [vmem:[%s59] sm:$0x1] %v58
    $region26: #{tpu_custom_call.1} parent=1 // loop_footer
      %s54 = sadd.s32 1, %s50
    $region27: #{tpu_custom_call.1} parent=1 // loop_footer_branch
      %49 = sbr.rel target = $region23
    $region28: #{tpu_custom_call.1} parent=1 // loop_exit
      _
    %s61 = scalar_lea.vmem [#allocation2], %s48
    %v62 = vld [vmem:[%s61] sm:$0xff]
    %v63 = vld [vmem:[#allocation8] sm:$0xff]
    %v64 = vld [vmem:[#allocation8 + $0x8] sm:$0xff]
    %v65 = vld [vmem:[#allocation8 + $0x10] sm:$0xff]
    %v66 = vld [vmem:[#allocation8 + $0x18] sm:$0xff]
    %v67 = vld [vmem:[#allocation8 + $0x20] sm:$0xff]
    %v68 = vld [vmem:[#allocation8 + $0x28] sm:$0xff]
    %v69 = vld [vmem:[#allocation8 + $0x30] sm:$0xff]
    %v70 = vld [vmem:[#allocation8 + $0x38] sm:$0xff]
    %v71 = vld [vmem:[#allocation8 + $0x40] sm:$0xff]
    %v72 = vld [vmem:[#allocation8 + $0x48] sm:$0xff]
    %v73 = vld [vmem:[#allocation8 + $0x50] sm:$0xff]
    %v74 = vld [vmem:[#allocation8 + $0x58] sm:$0xff]
    %v75 = vld [vmem:[#allocation8 + $0x60] sm:$0xff]
    %v76 = vld [vmem:[#allocation8 + $0x68] sm:$0xff]
    %v77 = vld [vmem:[#allocation8 + $0x70] sm:$0xff]
    %v78 = vld [vmem:[#allocation8 + $0x78] sm:$0xff]
    %v79 = vld [vmem:[%s3] sm:$0x1]
    %v81 = vlaneseq
    %v82 = vshrl.u32 %v81, 7
    %v83 = vsub.s32 0, %v82
    %v84 = vrot.slane %v79, %v83
    %86 = vmatprep.subr.mxu0 0.0
    %87 = vmatpush1.msra.mxu0 %v63
    %88 = vmatprep.subr.mxu0 0.0
    %89 = vmatpush1.msra.mxu0 %v64
    %90 = vmatprep.subr.mxu0 0.0
    %91 = vmatpush1.msra.mxu0 %v65
    %92 = vmatprep.subr.mxu0 0.0
    %93 = vmatpush1.msra.mxu0 %v66
    %94 = vmatprep.subr.mxu0 0.0
    %95 = vmatpush1.msra.mxu0 %v67
    %96 = vmatprep.subr.mxu0 0.0
    %97 = vmatpush1.msra.mxu0 %v68
    %98 = vmatprep.subr.mxu0 0.0
    %99 = vmatpush1.msra.mxu0 %v69
    %100 = vmatprep.subr.mxu0 0.0
    %101 = vmatpush1.msra.mxu0 %v70
    %102 = vmatprep.subr.mxu0 0.0
    %103 = vmatpush1.msra.mxu0 %v71
    %104 = vmatprep.subr.mxu0 0.0
    %105 = vmatpush1.msra.mxu0 %v72
    %106 = vmatprep.subr.mxu0 0.0
    %107 = vmatpush1.msra.mxu0 %v73
    %108 = vmatprep.subr.mxu0 0.0
    %109 = vmatpush1.msra.mxu0 %v74
    %110 = vmatprep.subr.mxu0 0.0
    %111 = vmatpush1.msra.mxu0 %v75
    %112 = vmatprep.subr.mxu0 0.0
    %113 = vmatpush1.msra.mxu0 %v76
    %114 = vmatprep.subr.mxu0 0.0
    %115 = vmatpush1.msra.mxu0 %v77
    %116 = vmatprep.subr.mxu0 0.0
    %117 = vmatpush1.msra.mxu0 %v78
    %118 = vmatprep.subr.mxu0 0.0
    %119 = vmatpush1.msra.mxu0 0.0
    %120 = vmatprep.subr.mxu0 0.0
    %121 = vmatpush1.msra.mxu0 0.0
    %122 = vmatprep.subr.mxu0 0.0
    %123 = vmatpush1.msra.mxu0 0.0
    %124 = vmatprep.subr.mxu0 0.0
    %125 = vmatpush1.msra.mxu0 0.0
    %126 = vmatprep.subr.mxu0 0.0
    %127 = vmatpush1.msra.mxu0 0.0
    %128 = vmatprep.subr.mxu0 0.0
    %129 = vmatpush1.msra.mxu0 0.0
    %130 = vmatprep.subr.mxu0 0.0
    %131 = vmatpush1.msra.mxu0 0.0
    %132 = vmatprep.subr.mxu0 0.0
    %133 = vmatpush1.msra.mxu0 0.0
    %134 = vmatprep.subr.mxu0 0.0
    %135 = vmatpush1.msra.mxu0 0.0
    %136 = vmatprep.subr.mxu0 0.0
    %137 = vmatpush1.msra.mxu0 0.0
    %138 = vmatprep.subr.mxu0 0.0
    %139 = vmatpush1.msra.mxu0 0.0
    %140 = vmatprep.subr.mxu0 0.0
    %141 = vmatpush1.msra.mxu0 0.0
    %142 = vmatprep.subr.mxu0 0.0
    %143 = vmatpush1.msra.mxu0 0.0
    %144 = vmatprep.subr.mxu0 0.0
    %145 = vmatpush1.msra.mxu0 0.0
    %146 = vmatprep.subr.mxu0 0.0
    %147 = vmatpush1.msra.mxu0 0.0
    %148 = vmatprep.subr.mxu0 0.0
    %149 = vmatpush1.msra.mxu0 0.0
    %150 = vmatprep.mubr.f32.mxu0 0.0
    %151 = vmatmul.mubr.f32.gmra.mrb[0].mxu0 %v62
    %v152 = vpop.f32.mrb[0].mxu0
    %v153 = vadd.f32 %v84, %v152
    %v154 = vpop.f32.mrb[0].mxu0
    %155 = vdwg.mxu0
    %156 = vst [vmem:[#allocation10] sm:$0xff] %v153
    // Predicated region
    $region29: #{tpu_custom_call.1} parent=1 // pred_check
      _
    $region30: #{tpu_custom_call.1} parent=1 // pred_check_branch
      %158 = sbr.rel (0) target = $region32
    $region31: #{tpu_custom_call.1} parent=1 // pred_region
      %s160 = ssub.s32 128, 128
      %161 = vsyncadd [#allocation7], %s160
      %s163 = sshll.u32 [#allocation10], 4
      %s164 = int_to_ptr.vmem [resolvable:$true] %s163
      %166 = dma.vmem_to_hbm [thread:$0]  %s164, 128, %s4, [#allocation7]
    $region32: #{tpu_custom_call.1} parent=1 // pred_fallthru
      _
    // Predicated region
    $region33: #{tpu_custom_call.1} parent=1 // pred_check
      _
    $region34: #{tpu_custom_call.1} parent=1 // pred_check_branch
      %168 = sbr.rel (0) target = $region36
    $region35: #{tpu_custom_call.1} parent=1 // pred_region
      %169 = dma.done [#allocation7], 128
    $region36: #{tpu_custom_call.1} parent=1 // pred_fallthru
      _
    %170 = vsyncpa [#allocation6], 1
    %171 = vsyncpa [#allocation9], 1
    %172 = vsyncpa [#allocation7], 1

</llo_original>
